<compile_context>
chip_gen: v5e
topology: v5e:2x2
jax: 0.10.0
libtpu: 0.0.40
codegen_flags: <defaults>
</compile_context>

<pallas_src>
import jax
import jax.numpy as jnp
from jax import lax
from jax.experimental import pallas as pl
from jax.experimental.pallas import tpu as pltpu

EPS = 1e-5  # torch.nn.LayerNorm default eps


def _round_up(x, m):
    return (x + m - 1) // m * m


def prenorm_linear(x, gamma, beta, w, b, *, tile_rows=256, tile_cols=256):
    """x: (B, S, D). Returns Linear(LayerNorm(x)); w: (D, D_out), b: (D_out,)."""
    B, S, D = x.shape
    D_in, D_out = w.shape
    assert D_in == D
    R = B * S

    # ---- host-side: fold the LayerNorm affine into the Linear weights ------
    gamma_f = gamma.astype(jnp.float32)
    beta_f = beta.astype(jnp.float32)
    w_f = w.astype(jnp.float32)
    w_eff = (gamma_f[:, None] * w_f).astype(w.dtype)   # (D, D_out), native dtype
    b_eff = beta_f @ w_f + b.astype(jnp.float32)       # (D_out,), f32, added post-accumulate

    # ---- pad K (=D) and N (=D_out) to lane-dense multiples of 128 ----------
    Dp = _round_up(D, 128)
    Np = _round_up(D_out, 128)

    x2 = x.reshape(R, D)
    if Dp != D:
        x2 = jnp.pad(x2, ((0, 0), (0, Dp - D)))
    if Dp != D or Np != D_out:
        w_p = jnp.pad(w_eff, ((0, Dp - D), (0, Np - D_out)))
    else:
        w_p = w_eff
    b_p = (jnp.pad(b_eff, ((0, Np - D_out),)) if Np != D_out else b_eff).reshape(1, Np)

    # ---- tiling -------------------------------------------------------------
    TR = min(_round_up(tile_rows, 16), _round_up(R, 16))   # rows per block
    TN = min(_round_up(tile_cols, 128), Np)                # output cols per block
    if Np % TN != 0:
        TN = 128                                           # Np is a multiple of 128
    grid = (pl.cdiv(R, TR), Np // TN)

    inv_d = 1.0 / D
    need_lane_mask = Dp != D
    mm_dtype = x.dtype

    def kernel(x_ref, w_ref, b_ref, o_ref, xn_ref):
        # LayerNorm once per row tile (innermost grid axis j == 0); reuse the
        # normalized rows from VMEM scratch for every N tile.
        @pl.when(pl.program_id(1) == 0)
        def _():
            xf = x_ref[...].astype(jnp.float32)
            mean = jnp.sum(xf, axis=-1, keepdims=True) * inv_d
            xc = xf - mean
            if need_lane_mask:
                lane = lax.broadcasted_iota(jnp.int32, xc.shape, 1)
                xc = jnp.where(lane < D, xc, 0.0)
            var = jnp.sum(xc * xc, axis=-1, keepdims=True) * inv_d
            xn_ref[...] = (xc * lax.rsqrt(var + EPS)).astype(xn_ref.dtype)

        # Native-dtype MXU matmul, f32 accumulation; bias (f32) added after.
        acc = jnp.dot(xn_ref[...], w_ref[...], preferred_element_type=jnp.float32)
        o_ref[...] = (acc + b_ref[...]).astype(o_ref.dtype)

    cost = pl.CostEstimate(
        flops=2 * R * D * D_out,
        transcendentals=0,
        bytes_accessed=(x2.size * x2.dtype.itemsize
                        + w_p.size * w_p.dtype.itemsize
                        + R * Np * x.dtype.itemsize),
    )

    out = pl.pallas_call(
        kernel,
        out_shape=jax.ShapeDtypeStruct((R, Np), x.dtype),
        grid_spec=pltpu.PrefetchScalarGridSpec(
            num_scalar_prefetch=0,
            grid=grid,
            in_specs=[
                pl.BlockSpec((TR, Dp), lambda i, j: (i, 0)),   # x rows (same block across j)
                pl.BlockSpec((Dp, TN), lambda i, j: (0, j)),   # fused weight, N-tiled
                pl.BlockSpec((1, TN), lambda i, j: (0, j)),    # fused bias,   N-tiled
            ],
            out_specs=pl.BlockSpec((TR, TN), lambda i, j: (i, j)),
            scratch_shapes=[pltpu.VMEM((TR, Dp), mm_dtype)],   # normalized rows
        ),
        compiler_params=pltpu.CompilerParams(
            dimension_semantics=("parallel", "arbitrary"),
            vmem_limit_bytes=64 * 1024 * 1024,
        ),
        cost_estimate=cost,
    )(x2, w_p, b_p)

    return out[:, :D_out].reshape(B, S, D_out)


def reference(x, gamma, beta, w, b):
    xf = x.astype(jnp.float32)
    mean = jnp.mean(xf, axis=-1, keepdims=True)
    var = jnp.mean((xf - mean) ** 2, axis=-1, keepdims=True)
    xn = (xf - mean) * lax.rsqrt(var + EPS)
    y = xn * gamma + beta
    return (y @ w + b).astype(x.dtype)


if __name__ == "__main__":
    B, S, D = 2, 8, 32  # batch=2, seq=8, hidden(dim)=32

    key = jax.random.PRNGKey(0)
    kx, kg, kb, kw, kbi = jax.random.split(key, 5)

    x = jax.random.normal(kx, (B, S, D), dtype=jnp.float32)

    # LayerNorm params (perturbed deterministically so the affine path is exercised).
    gamma = 1.0 + 0.1 * jax.random.normal(kg, (D,), dtype=jnp.float32)
    beta = 0.1 * jax.random.normal(kb, (D,), dtype=jnp.float32)

    # fn = Linear(D, D) params, stored as (D_in, D_out)
    w = jax.random.normal(kw, (D, D), dtype=jnp.float32) / jnp.sqrt(D)
    b = 0.1 * jax.random.normal(kbi, (D,), dtype=jnp.float32)

    out = prenorm_linear(x, gamma, beta, w, b)
    jax.block_until_ready(out)

    ref = reference(x, gamma, beta, w, b)
    assert out.shape == ref.shape
    assert jnp.allclose(out, ref, atol=1e-4, rtol=1e-4), "mismatch vs reference"

    print("KERNEL_OK")
</pallas_src>

<mosaic_0001>
module attributes {stable_mosaic.version = 11 : i64} {
  func.func @kernel(%arg0: i32, %arg1: i32, %arg2: memref<16x128xf32, #tpu.memory_space<vmem>>, %arg3: memref<128x128xf32, #tpu.memory_space<vmem>>, %arg4: memref<1x128xf32, #tpu.memory_space<vmem>>, %arg5: memref<16x128xf32, #tpu.memory_space<vmem>>, %arg6: memref<16x128xf32, #tpu.memory_space<vmem>>) attributes {dimension_semantics = [#tpu.dimension_semantics<parallel>, #tpu.dimension_semantics<arbitrary>], iteration_bounds = array<i64: 1, 1>, scalar_prefetch = 0 : i64, scratch_operands = 1 : i64, tpu.core_type = #tpu.core_type<tc>, window_params = [{transform_indices = @transform_0, window_bounds = array<i64: 16, 128>}, {transform_indices = @transform_1, window_bounds = array<i64: 128, 128>}, {transform_indices = @transform_2, window_bounds = array<i64: 1, 128>}, {transform_indices = @transform_3, window_bounds = array<i64: 16, 128>}]} {
    %c0_i32 = arith.constant 0 : i32
    %0 = arith.cmpi eq, %arg1, %c0_i32 : i32
    %1 = arith.extui %0 : i1 to i32
    %c0_i32_0 = arith.constant 0 : i32
    %2 = arith.cmpi ne, %1, %c0_i32_0 : i32
    scf.if %2 {
      %c0_8 = arith.constant 0 : index
      %c0_9 = arith.constant 0 : index
      %10 = vector.load %arg2[%c0_8, %c0_9] : memref<16x128xf32, #tpu.memory_space<vmem>>, vector<16x128xf32>
      %cst_10 = arith.constant dense<0.000000e+00> : vector<16xf32>
      %11 = vector.multi_reduction <add>, %10, %cst_10 [1] : vector<16x128xf32> to vector<16xf32>
      %12 = vector.shape_cast %11 : vector<16xf32> to vector<16x1xf32>
      %cst_11 = arith.constant 3.125000e-02 : f32
      %13 = vector.broadcast %cst_11 : f32 to vector<16x1xf32>
      %14 = arith.mulf %12, %13 : vector<16x1xf32>
      %15 = vector.broadcast %14 : vector<16x1xf32> to vector<16x128xf32>
      %16 = arith.subf %10, %15 : vector<16x128xf32>
      %17 = tpu.iota {dimensions = array<i32: 1>} : vector<16x128xi32>
      %c32_i32 = arith.constant 32 : i32
      %18 = vector.broadcast %c32_i32 : i32 to vector<16x128xi32>
      %19 = arith.cmpi slt, %17, %18 : vector<16x128xi32>
      %cst_12 = arith.constant 0.000000e+00 : f32
      %20 = vector.broadcast %cst_12 : f32 to vector<16x128xf32>
      %21 = arith.select %19, %16, %20 : vector<16x128xi1>, vector<16x128xf32>
      %22 = arith.mulf %21, %21 : vector<16x128xf32>
      %cst_13 = arith.constant dense<0.000000e+00> : vector<16xf32>
      %23 = vector.multi_reduction <add>, %22, %cst_13 [1] : vector<16x128xf32> to vector<16xf32>
      %24 = vector.shape_cast %23 : vector<16xf32> to vector<16x1xf32>
      %cst_14 = arith.constant 3.125000e-02 : f32
      %25 = vector.broadcast %cst_14 : f32 to vector<16x1xf32>
      %26 = arith.mulf %24, %25 : vector<16x1xf32>
      %cst_15 = arith.constant 9.99999974E-6 : f32
      %27 = vector.broadcast %cst_15 : f32 to vector<16x1xf32>
      %28 = arith.addf %26, %27 : vector<16x1xf32>
      %29 = math.rsqrt %28 : vector<16x1xf32>
      %30 = vector.broadcast %29 : vector<16x1xf32> to vector<16x128xf32>
      %31 = arith.mulf %21, %30 : vector<16x128xf32>
      %c0_16 = arith.constant 0 : index
      %c0_17 = arith.constant 0 : index
      %32 = vector.load %arg6[%c0_16, %c0_17] : memref<16x128xf32, #tpu.memory_space<vmem>>, vector<16x128xf32>
      tpu.vector_store %arg6[%c0_16, %c0_17], %31 {strides = array<i32>} : memref<16x128xf32, #tpu.memory_space<vmem>>, vector<16x128xf32>,
    } else {
    }
    %c0 = arith.constant 0 : index
    %c0_1 = arith.constant 0 : index
    %3 = vector.load %arg6[%c0, %c0_1] : memref<16x128xf32, #tpu.memory_space<vmem>>, vector<16x128xf32>
    %c0_2 = arith.constant 0 : index
    %c0_3 = arith.constant 0 : index
    %4 = vector.load %arg3[%c0_2, %c0_3] : memref<128x128xf32, #tpu.memory_space<vmem>>, vector<128x128xf32>
    %cst = arith.constant dense<0.000000e+00> : vector<16x128xf32>
    %5 = tpu.matmul %3, %4, %cst {dimension_numbers = #tpu.dot_dimension_numbers<[1], [0], [0], [1], [0, 0, 1, 1], [], []>} : vector<16x128xf32>, vector<128x128xf32>, vector<16x128xf32> -> vector<16x128xf32>
    %c0_4 = arith.constant 0 : index
    %c0_5 = arith.constant 0 : index
    %6 = vector.load %arg4[%c0_4, %c0_5] : memref<1x128xf32, #tpu.memory_space<vmem>>, vector<1x128xf32>
    %7 = vector.broadcast %6 : vector<1x128xf32> to vector<16x128xf32>
    %8 = arith.addf %5, %7 : vector<16x128xf32>
    %c0_6 = arith.constant 0 : index
    %c0_7 = arith.constant 0 : index
    %9 = vector.load %arg5[%c0_6, %c0_7] : memref<16x128xf32, #tpu.memory_space<vmem>>, vector<16x128xf32>
    tpu.vector_store %arg5[%c0_6, %c0_7], %8 {strides = array<i32>} : memref<16x128xf32, #tpu.memory_space<vmem>>, vector<16x128xf32>,
    return
  }
  func.func @transform_0(%arg0: i32, %arg1: i32) -> (i32, i32) {
    %c0_i32 = arith.constant 0 : i32
    %c0_i32_0 = arith.constant 0 : i32
    return %arg0, %c0_i32 : i32, i32
  }
  func.func @transform_1(%arg0: i32, %arg1: i32) -> (i32, i32) {
    %c0_i32 = arith.constant 0 : i32
    %c0_i32_0 = arith.constant 0 : i32
    return %c0_i32, %arg1 : i32, i32
  }
  func.func @transform_2(%arg0: i32, %arg1: i32) -> (i32, i32) {
    %c0_i32 = arith.constant 0 : i32
    %c0_i32_0 = arith.constant 0 : i32
    return %c0_i32, %arg1 : i32, i32
  }
  func.func @transform_3(%arg0: i32, %arg1: i32) -> (i32, i32) {
    %c0_i32 = arith.constant 0 : i32
    return %arg0, %arg1 : i32, i32
  }
}

</mosaic_0001>

<llo_original>
// kernel: tpu_custom_call.1
$region0: #{tpu_custom_call.1}
  #allocation0 [shape = 'u32[]', space=smem, size = 0x4, offset = 0x4, fixed_abs, tag = 'smem constant byte address 0x4 - core index']
  #allocation1 [shape = 'u32[72,128]{1,0:T(1,128)}', space=vmem, size = 0x9000, scoped, tag = 'internal scratch']
  #allocation2 [shape = 'f32[16,128]{1,0:T(8,128)}', space=vmem, size = 0x2000, scoped, tag = 'scratch operand']
  %s0 = inlined_call_operand.hbm [shape: f32[16,128], index: 0, kind: input, shape index: {}]
  %s1 = inlined_call_operand.hbm [shape: f32[128,128], index: 1, kind: input, shape index: {}]
  %s2 = inlined_call_operand.vmem [shape: f32[1,128], index: 2, kind: input, shape index: {}]
  %s3 = inlined_call_operand.hbm [shape: f32[16,128], index: 3, kind: output, shape index: {}]
  %s4 = sld [smem:[#allocation0]]
  $region34: #{tpu_custom_call.1} parent=0
    _
  %s6 = ssub.s32 1, %s4
  %s7 = scalar_select 0, %s6, %s4
  $region1: #{tpu_custom_call.1} parent=0
    #allocation3 [shape = 'u8[8192]{0}', space=vmem, size = 0x2000, scoped, tag = 'input window, operand 0, single buffered']
    #allocation4 [shape = 's32[1]{0}', space=sflag, size = 0x4, scoped, tag = 'scoped memory for tpu_custom_call.1']
    #allocation5 [shape = 's32[1]{0}', space=sflag, size = 0x4, scoped, tag = 'scoped memory for tpu_custom_call.1']
    #allocation6 [shape = 'u8[65536]{0}', space=vmem, size = 0x10000, scoped, tag = 'input window, operand 1, single buffered']
    #allocation7 [shape = 's32[1]{0}', space=sflag, size = 0x4, scoped, tag = 'scoped memory for tpu_custom_call.1']
    #allocation8 [shape = 'u8[8192]{0}', space=vmem, size = 0x2000, scoped, tag = 'output window, operand 0, single buffered']
    %8 = vsyncpa [#allocation4], 0
    %9 = vsyncpa [#allocation7], 0
    %10 = vsyncpa [#allocation5], 0
    // Predicated region
    $region2: #{tpu_custom_call.1} parent=1 // pred_check
      _
    $region3: #{tpu_custom_call.1} parent=1 // pred_check_branch
      %12 = sbr.rel (0) target = $region5
    $region4: #{tpu_custom_call.1} parent=1 // pred_region
      %14 = vsyncadd [#allocation4], 0
      %s15 = sshll.u32 %s0, 4
      %s16 = int_to_ptr.hbm [resolvable:$true] %s15
      %s17 = sshll.u32 [#allocation3], 4
      %s18 = int_to_ptr.vmem [resolvable:$true] %s17
      %23 = dma.hbm_to_vmem [thread:$0]  %s16, 256, %s18, [#allocation4], 128, 128, 8
    $region5: #{tpu_custom_call.1} parent=1 // pred_fallthru
      _
    // Predicated region
    $region6: #{tpu_custom_call.1} parent=1 // pred_check
      _
    $region7: #{tpu_custom_call.1} parent=1 // pred_check_branch
      %25 = sbr.rel (0) target = $region9
    $region8: #{tpu_custom_call.1} parent=1 // pred_region
      %27 = vsyncadd [#allocation7], 0
      %s28 = sshll.u32 %s1, 4
      %s29 = int_to_ptr.hbm [resolvable:$true] %s28
      %s30 = sshll.u32 [#allocation6], 4
      %s31 = int_to_ptr.vmem [resolvable:$true] %s30
      %36 = dma.hbm_to_vmem [thread:$0]  %s29, 2048, %s31, [#allocation7], 128, 128, 8
    $region9: #{tpu_custom_call.1} parent=1 // pred_fallthru
      _
    // Predicated region
    $region10: #{tpu_custom_call.1} parent=1 // pred_check
      _
    $region11: #{tpu_custom_call.1} parent=1 // pred_check_branch
      %38 = sbr.rel (0) target = $region13
    $region12: #{tpu_custom_call.1} parent=1 // pred_region
      _
    $region13: #{tpu_custom_call.1} parent=1 // pred_fallthru
      _
    // Predicated region
    $region14: #{tpu_custom_call.1} parent=1 // pred_check
      _
    $region15: #{tpu_custom_call.1} parent=1 // pred_check_branch
      %40 = sbr.rel (0) target = $region17
    $region16: #{tpu_custom_call.1} parent=1 // pred_region
      %42 = dma.done [#allocation4], 256
    $region17: #{tpu_custom_call.1} parent=1 // pred_fallthru
      _
    // Predicated region
    $region18: #{tpu_custom_call.1} parent=1 // pred_check
      _
    $region19: #{tpu_custom_call.1} parent=1 // pred_check_branch
      %44 = sbr.rel (0) target = $region21
    $region20: #{tpu_custom_call.1} parent=1 // pred_region
      %46 = dma.done [#allocation7], 2048
    $region21: #{tpu_custom_call.1} parent=1 // pred_fallthru
      _
    %p47 = scmp.eq.s32.totalorder 0, 0
    // Predicated region
    $region22: #{tpu_custom_call.1} parent=1 // pred_check
      %p48 = pneg %p47
    $region23: #{tpu_custom_call.1} parent=1 // pred_check_branch
      %50 = sbr.rel (%p48) target = $region25
    $region24: #{tpu_custom_call.1} parent=1 // pred_region
      %v51 = vld [vmem:[#allocation3] sm:$0xff]
      %v52 = vld [vmem:[#allocation3 + $0x8] sm:$0xff]
      %53 = vadd.xlane.f32.xlu0 %v51
      %v54 = vpop.xlane.xlu0 %53
      %55 = vadd.xlane.f32.xlu0 %v52
      %v56 = vpop.xlane.xlu0 %55
      %v57 = vmul.f32 %v54, 0.03125
      %v58 = vmul.f32 %v56, 0.03125
      %v59 = vsub.f32 %v51, %v57
      %v60 = vsub.f32 %v52, %v58
      %v61 = vlaneseq
      %v62 = vand.u32 %v61, 127
      %vm63 = vcmp.lt.s32.totalorder %v62, 32
      %v64 = vsel %vm63, %v59, 0.0
      %v65 = vsel %vm63, %v60, 0.0
      %v66 = vmul.f32 %v64, %v64
      %v67 = vmul.f32 %v65, %v65
      %68 = vadd.xlane.f32.xlu0 %v66
      %v69 = vpop.xlane.xlu0 %68
      %70 = vadd.xlane.f32.xlu0 %v67
      %v71 = vpop.xlane.xlu0 %70
      %v72 = vmul.f32 %v69, 0.03125
      %v73 = vmul.f32 %v71, 0.03125
      %v74 = vadd.f32 %v72, 1e-05
      %v75 = vadd.f32 %v73, 1e-05
      %v76 = vrsqrt.pop %v74
      %v77 = vmul.f32 %v76, %v74
      %v78 = vmul.f32 %v77, %v76
      %v79 = vmul.f32 0.5, %v78
      %v80 = vsub.f32 1.5, %v79
      %v81 = vmul.f32 %v76, %v80
      %vm82 = vweird.f32 %v74
      %vm83 = vweird.f32 %v76
      %vm84 = vmor %vm82, %vm83
      %v85 = vsel %vm84, %v76, %v81
      %v86 = vrsqrt.pop %v75
      %v87 = vmul.f32 %v86, %v75
      %v88 = vmul.f32 %v87, %v86
      %v89 = vmul.f32 0.5, %v88
      %v90 = vsub.f32 1.5, %v89
      %v91 = vmul.f32 %v86, %v90
      %vm92 = vweird.f32 %v75
      %vm93 = vweird.f32 %v86
      %vm94 = vmor %vm92, %vm93
      %v95 = vsel %vm94, %v86, %v91
      %v96 = vmul.f32 %v64, %v85
      %v97 = vmul.f32 %v65, %v95
      %98 = vst [vmem:[#allocation2] sm:$0xff] %v96
      %99 = vst [vmem:[#allocation2 + $0x8] sm:$0xff] %v97
    $region25: #{tpu_custom_call.1} parent=1 // pred_fallthru
      _
    %v100 = vld [vmem:[#allocation2] sm:$0xff]
    %v101 = vld [vmem:[#allocation2 + $0x8] sm:$0xff]
    %v102 = vld [vmem:[#allocation6] sm:$0xff]
    %v103 = vld [vmem:[#allocation6 + $0x8] sm:$0xff]
    %v104 = vld [vmem:[#allocation6 + $0x10] sm:$0xff]
    %v105 = vld [vmem:[#allocation6 + $0x18] sm:$0xff]
    %v106 = vld [vmem:[#allocation6 + $0x20] sm:$0xff]
    %v107 = vld [vmem:[#allocation6 + $0x28] sm:$0xff]
    %v108 = vld [vmem:[#allocation6 + $0x30] sm:$0xff]
    %v109 = vld [vmem:[#allocation6 + $0x38] sm:$0xff]
    %v110 = vld [vmem:[#allocation6 + $0x40] sm:$0xff]
    %v111 = vld [vmem:[#allocation6 + $0x48] sm:$0xff]
    %v112 = vld [vmem:[#allocation6 + $0x50] sm:$0xff]
    %v113 = vld [vmem:[#allocation6 + $0x58] sm:$0xff]
    %v114 = vld [vmem:[#allocation6 + $0x60] sm:$0xff]
    %v115 = vld [vmem:[#allocation6 + $0x68] sm:$0xff]
    %v116 = vld [vmem:[#allocation6 + $0x70] sm:$0xff]
    %v117 = vld [vmem:[#allocation6 + $0x78] sm:$0xff]
    %v118 = vld [vmem:[%s2] sm:$0x1]
    %v120 = vperm.slane %v118, 0
    %122 = vmatpush.msra.mxu0 %v117
    %123 = vmatpush.msra.mxu0 %v116
    %124 = vmatpush.msra.mxu0 %v115
    %125 = vmatpush.msra.mxu0 %v114
    %126 = vmatpush.msra.mxu0 %v113
    %127 = vmatpush.msra.mxu0 %v112
    %128 = vmatpush.msra.mxu0 %v111
    %129 = vmatpush.msra.mxu0 %v110
    %130 = vmatpush.msra.mxu0 %v109
    %131 = vmatpush.msra.mxu0 %v108
    %132 = vmatpush.msra.mxu0 %v107
    %133 = vmatpush.msra.mxu0 %v106
    %134 = vmatpush.msra.mxu0 %v105
    %135 = vmatpush.msra.mxu0 %v104
    %136 = vmatpush.msra.mxu0 %v103
    %137 = vmatpush.msra.mxu0 %v102
    %138 = vmatmul.f32.gmra.mxu0 %v100
    %v139 = vpop.f32.mrf.mxu0
    %v140 = vadd.f32 %v120, %v139
    %141 = vmatmul.f32.gmra.mxu0 %v101
    %v142 = vpop.f32.mrf.mxu0
    %v143 = vadd.f32 %v120, %v142
    %144 = vdwg.mxu0
    %145 = vst [vmem:[#allocation8] sm:$0xff] %v140
    %146 = vst [vmem:[#allocation8 + $0x8] sm:$0xff] %v143
    // Predicated region
    $region26: #{tpu_custom_call.1} parent=1 // pred_check
      _
    $region27: #{tpu_custom_call.1} parent=1 // pred_check_branch
      %148 = sbr.rel (0) target = $region29
    $region28: #{tpu_custom_call.1} parent=1 // pred_region
      %150 = vsyncadd [#allocation5], 0
      %s151 = sshll.u32 [#allocation8], 4
      %s152 = int_to_ptr.vmem [resolvable:$true] %s151
      %s153 = sshll.u32 %s3, 4
      %s154 = int_to_ptr.hbm [resolvable:$true] %s153
      %159 = dma.vmem_to_hbm [thread:$0]  %s152, 256, %s154, [#allocation5], 128, 128, 8
    $region29: #{tpu_custom_call.1} parent=1 // pred_fallthru
      _
    // Predicated region
    $region30: #{tpu_custom_call.1} parent=1 // pred_check
      _
    $region31: #{tpu_custom_call.1} parent=1 // pred_check_branch
      %161 = sbr.rel (0) target = $region33
    $region32: #{tpu_custom_call.1} parent=1 // pred_region
      %163 = dma.done [#allocation5], 256
    $region33: #{tpu_custom_call.1} parent=1 // pred_fallthru
      _
    %164 = vsyncpa [#allocation4], 1
    %165 = vsyncpa [#allocation7], 1
    %166 = vsyncpa [#allocation5], 1

</llo_original>
